<compile_context>
chip_gen: v7x
topology: tpu7x:2x2x1
jax: 0.10.0
libtpu: 0.0.40
codegen_flags: <defaults>
</compile_context>

<pallas_src>
import math
import jax
import jax.numpy as jnp
from jax.experimental import pallas as pl
from jax.experimental.pallas import tpu as pltpu

NC_PAD = 128  # lane-dense padded class dimension (one full lane width)


def linear_kernel(x_ref, w_ref, b_ref, o_ref):
    # x_ref: (TB, F) f32   -> cast to bf16 in-kernel (MXU-native inputs)
    # w_ref: (F, NC_PAD) bf16 (pre-transposed, zero-padded, VMEM-resident)
    # b_ref: (1, NC_PAD) f32  (VMEM-resident, broadcast over batch)
    # o_ref: (TB, NC_PAD) out dtype (bf16 by default)
    y = jnp.dot(x_ref[...].astype(jnp.bfloat16), w_ref[...],
                preferred_element_type=jnp.float32)
    o_ref[...] = (y + b_ref[...]).astype(o_ref.dtype)


def prepare_linear_params(weight, bias):
    """One-time layout plumbing (do this at init, not on every forward call).

    weight: (NC, F), bias: (NC,) -> (w_t (F, NC_PAD) bf16, b_pad (1, NC_PAD) f32).
    """
    NC, F = weight.shape
    assert NC <= NC_PAD
    w_t = jnp.zeros((F, NC_PAD), jnp.bfloat16).at[:, :NC].set(
        weight.T.astype(jnp.bfloat16))
    b_pad = jnp.zeros((1, NC_PAD), jnp.float32).at[:, :NC].set(
        bias.astype(jnp.float32))
    return w_t, b_pad


def _round_up(x, m):
    return ((x + m - 1) // m) * m


def _pick_tb(B, F, tb_max=8192):
    """Batch tile: ~8 MiB f32 x tile per buffer, >=2 tiles for moderate B."""
    if B <= 8:
        return B  # full-array block (block dim == array dim is always legal)
    tb = max(8, min(tb_max, ((8 << 20) // (F * 4)) // 8 * 8))
    if B <= tb:
        # Guarantee at least 2 grid steps so v7x's second TensorCore is used.
        tb = max(8, _round_up(pl.cdiv(B, 2), 8))
    return tb


def linear_net_forward(x, w_t, b_pad, num_classes, *,
                       out_dtype=jnp.bfloat16, padded_output=False):
    """x: (B, C, H, W); w_t/b_pad from prepare_linear_params.

    Returns (B, num_classes) logits in out_dtype (or (B, NC_PAD) if
    padded_output=True, letting the consumer fuse/skip the column slice).
    """
    B = x.shape[0]
    F = w_t.shape[0]
    x_flat = x.reshape(B, -1)            # glue: flatten like x.view(B, -1)
    assert x_flat.shape[1] == F

    TB = _pick_tb(B, F)
    grid = (pl.cdiv(B, TB),)             # ragged last block: no jnp.pad copy

    out_bytes = jnp.dtype(out_dtype).itemsize
    in_bytes = x_flat.dtype.itemsize
    cost = pl.CostEstimate(
        flops=2 * B * F * NC_PAD,
        transcendentals=0,
        bytes_accessed=(x_flat.size * in_bytes + w_t.size * 2
                        + b_pad.size * 4 + B * NC_PAD * out_bytes),
    )

    # Double-buffered x + out tiles, plus resident W/bias; clamp under v7x's
    # 64 MiB physical VMEM with headroom.
    working_set = (2 * TB * F * in_bytes + 2 * TB * NC_PAD * out_bytes
                   + w_t.size * 2 + b_pad.size * 4)
    vmem_limit = int(min(max(32 << 20, working_set + (8 << 20)), 56 << 20))

    out = pl.pallas_call(
        linear_kernel,
        out_shape=jax.ShapeDtypeStruct((B, NC_PAD), out_dtype),
        grid_spec=pl.GridSpec(
            grid=grid,
            in_specs=[
                pl.BlockSpec((TB, F), lambda i: (i, 0)),      # x: pipelined tiles
                pl.BlockSpec((F, NC_PAD), lambda i: (0, 0)),  # W: VMEM-resident
                pl.BlockSpec((1, NC_PAD), lambda i: (0, 0)),  # bias: VMEM-resident
            ],
            out_specs=pl.BlockSpec((TB, NC_PAD), lambda i: (i, 0)),
        ),
        compiler_params=pltpu.CompilerParams(
            dimension_semantics=("parallel",),  # shard batch tiles across TCs
            vmem_limit_bytes=vmem_limit,
        ),
        cost_estimate=cost,
    )(x_flat, w_t, b_pad)

    if padded_output:
        # Consumer must mask/ignore columns >= num_classes (they are 0).
        return out
    return out[:, :num_classes]


def init_linear_params(key, input_size, num_classes):
    """Deterministic init mimicking torch.nn.Linear defaults."""
    kw, kb = jax.random.split(key)
    bound_w = 1.0 / math.sqrt(input_size)   # kaiming_uniform(a=sqrt(5)) bound
    weight = jax.random.uniform(
        kw, (num_classes, input_size), jnp.float32, -bound_w, bound_w)
    bias = jax.random.uniform(
        kb, (num_classes,), jnp.float32, -bound_w, bound_w)
    return weight, bias


if __name__ == "__main__":
    # Small shapes consistent with the module: B=2, C=1, H=W=16 -> input_size=256.
    B, C, H, W = 2, 1, 16, 16
    input_size = C * H * W
    num_classes = 10

    key = jax.random.PRNGKey(0)
    kx, kp = jax.random.split(key)
    x = jax.random.normal(kx, (B, C, H, W), jnp.float32)
    weight, bias = init_linear_params(kp, input_size, num_classes)

    # One-time parameter prep (transpose + pad + bf16 cast), then forward.
    w_t, b_pad = prepare_linear_params(weight, bias)
    y = linear_net_forward(x, w_t, b_pad, num_classes)
    y = jax.block_until_ready(y)

    # Reference check in plain JAX (same math as the PyTorch forward).
    # bf16 matmul inputs + bf16 logits -> loosen tolerance vs. f32 reference.
    y_ref = x.reshape(B, -1) @ weight.T + bias
    assert y.shape == (B, num_classes)
    assert jnp.allclose(y.astype(jnp.float32), y_ref, atol=5e-2, rtol=5e-2), (
        f"max abs err {jnp.max(jnp.abs(y.astype(jnp.float32) - y_ref))}")

    print("KERNEL_OK")
</pallas_src>

<mosaic_0001>
module attributes {stable_mosaic.version = 11 : i64} {
  func.func @linear_kernel(%arg0: i32, %arg1: memref<2x256xf32, #tpu.memory_space<vmem>>, %arg2: memref<256x128xbf16, #tpu.memory_space<vmem>>, %arg3: memref<1x128xf32, #tpu.memory_space<vmem>>, %arg4: memref<2x128xbf16, #tpu.memory_space<vmem>>) attributes {dimension_semantics = [#tpu.dimension_semantics<parallel>], iteration_bounds = array<i64: 1>, scalar_prefetch = 0 : i64, scratch_operands = 0 : i64, tpu.core_type = #tpu.core_type<tc>, window_params = [{transform_indices = @transform_0, window_bounds = array<i64: 2, 256>}, {pipeline_mode = #tpu.pipeline_mode<synchronous>, transform_indices = @transform_1, window_bounds = array<i64: 256, 128>}, {pipeline_mode = #tpu.pipeline_mode<synchronous>, transform_indices = @transform_2, window_bounds = array<i64: 1, 128>}, {transform_indices = @transform_3, window_bounds = array<i64: 2, 128>}]} {
    %c0 = arith.constant 0 : index
    %c0_0 = arith.constant 0 : index
    %0 = vector.load %arg1[%c0, %c0_0] : memref<2x256xf32, #tpu.memory_space<vmem>>, vector<2x256xf32>
    %1 = arith.truncf %0 : vector<2x256xf32> to vector<2x256xbf16>
    %c0_1 = arith.constant 0 : index
    %c0_2 = arith.constant 0 : index
    %2 = vector.load %arg2[%c0_1, %c0_2] : memref<256x128xbf16, #tpu.memory_space<vmem>>, vector<256x128xbf16>
    %cst = arith.constant dense<0.000000e+00> : vector<2x128xf32>
    %3 = tpu.matmul %1, %2, %cst {dimension_numbers = #tpu.dot_dimension_numbers<[1], [0], [0], [1], [0, 0, 1, 1], [], []>} : vector<2x256xbf16>, vector<256x128xbf16>, vector<2x128xf32> -> vector<2x128xf32>
    %c0_3 = arith.constant 0 : index
    %c0_4 = arith.constant 0 : index
    %4 = vector.load %arg3[%c0_3, %c0_4] : memref<1x128xf32, #tpu.memory_space<vmem>>, vector<1x128xf32>
    %5 = vector.broadcast %4 : vector<1x128xf32> to vector<2x128xf32>
    %6 = arith.addf %3, %5 : vector<2x128xf32>
    %7 = arith.truncf %6 : vector<2x128xf32> to vector<2x128xbf16>
    %c0_5 = arith.constant 0 : index
    %c0_6 = arith.constant 0 : index
    %8 = vector.load %arg4[%c0_5, %c0_6] : memref<2x128xbf16, #tpu.memory_space<vmem>>, vector<2x128xbf16>
    tpu.vector_store %arg4[%c0_5, %c0_6], %7 {strides = array<i32>} : memref<2x128xbf16, #tpu.memory_space<vmem>>, vector<2x128xbf16>,
    return
  }
  func.func @transform_0(%arg0: i32) -> (i32, i32) {
    %c0_i32 = arith.constant 0 : i32
    %c0_i32_0 = arith.constant 0 : i32
    return %arg0, %c0_i32 : i32, i32
  }
  func.func @transform_1(%arg0: i32) -> (i32, i32) {
    %c0_i32 = arith.constant 0 : i32
    %c0_i32_0 = arith.constant 0 : i32
    %c0_i32_1 = arith.constant 0 : i32
    return %c0_i32, %c0_i32_0 : i32, i32
  }
  func.func @transform_2(%arg0: i32) -> (i32, i32) {
    %c0_i32 = arith.constant 0 : i32
    %c0_i32_0 = arith.constant 0 : i32
    %c0_i32_1 = arith.constant 0 : i32
    return %c0_i32, %c0_i32_0 : i32, i32
  }
  func.func @transform_3(%arg0: i32) -> (i32, i32) {
    %c0_i32 = arith.constant 0 : i32
    %c0_i32_0 = arith.constant 0 : i32
    return %arg0, %c0_i32 : i32, i32
  }
}

</mosaic_0001>

<llo_original>
// kernel: tpu_custom_call.1
$region0: #{tpu_custom_call.1}
  #allocation0 [shape = 'u32[]', space=smem, size = 0x4, offset = 0x4, fixed_abs, tag = 'smem constant byte address 0x4 - core index']
  #allocation1 [shape = 'u32[144,128]{1,0:T(1,128)}', space=vmem, size = 0x12000, scoped, tag = 'internal scratch']
  %s0 = inlined_call_operand.hbm [shape: f32[2,256], index: 0, kind: input, shape index: {}]
  %s1 = inlined_call_operand.hbm [shape: bf16[256,128], index: 1, kind: input, shape index: {}]
  %s2 = inlined_call_operand.vmem [shape: f32[1,128], index: 2, kind: input, shape index: {}]
  %s3 = inlined_call_operand.hbm [shape: bf16[2,128], index: 3, kind: output, shape index: {}]
  %s4 = sld [smem:[#allocation0]]
  $region30: #{tpu_custom_call.1} parent=0
    _
  %s6 = ssub.s32 1, %s4
  %s7 = scalar_select 0, %s6, %s4
  $region1: #{tpu_custom_call.1} parent=0
    #allocation2 [shape = 'u8[2048]{0}', space=vmem, size = 0x800, scoped, tag = 'input window, operand 0, single buffered']
    #allocation3 [shape = 's32[1]{0}', space=sflag, size = 0x4, scoped, tag = 'scoped memory for tpu_custom_call.1']
    #allocation4 [shape = 's32[1]{0}', space=sflag, size = 0x4, scoped, tag = 'scoped memory for tpu_custom_call.1']
    #allocation5 [shape = 'u8[65536]{0}', space=vmem, size = 0x10000, scoped, tag = 'input window, operand 1, single buffered']
    #allocation6 [shape = 's32[1]{0}', space=sflag, size = 0x4, scoped, tag = 'scoped memory for tpu_custom_call.1']
    #allocation7 [shape = 'u8[512]{0}', space=vmem, size = 0x400, scoped, tag = 'output window, operand 0, single buffered']
    %8 = vsyncpa [#allocation3], 0
    %9 = vsyncpa [#allocation6], 0
    %10 = vsyncpa [#allocation4], 0
    // Predicated region
    $region2: #{tpu_custom_call.1} parent=1 // pred_check
      _
    $region3: #{tpu_custom_call.1} parent=1 // pred_check_branch
      %12 = sbr.rel (0) target = $region5
    $region4: #{tpu_custom_call.1} parent=1 // pred_region
      %s14 = ssub.s32 64, 64
      %15 = vsyncadd [#allocation3], %s14
      %s17 = sshll.u32 [#allocation2], 4
      %s18 = int_to_ptr.vmem [resolvable:$true] %s17
      %20 = dma.hbm_to_vmem [thread:$0]  %s0, 64, %s18, [#allocation3]
    $region5: #{tpu_custom_call.1} parent=1 // pred_fallthru
      _
    // Predicated region
    $region6: #{tpu_custom_call.1} parent=1 // pred_check
      _
    $region7: #{tpu_custom_call.1} parent=1 // pred_check_branch
      %22 = sbr.rel (0) target = $region9
    $region8: #{tpu_custom_call.1} parent=1 // pred_region
      %s24 = ssub.s32 2048, 2048
      %25 = vsyncadd [#allocation6], %s24
      %s26 = sshll.u32 [#allocation5], 4
      %s27 = int_to_ptr.vmem [resolvable:$true] %s26
      %32 = dma.hbm_to_vmem [thread:$0]  %s1, 2048, %s27, [#allocation6], 64, 64, 4
    $region9: #{tpu_custom_call.1} parent=1 // pred_fallthru
      _
    // Predicated region
    $region10: #{tpu_custom_call.1} parent=1 // pred_check
      _
    $region11: #{tpu_custom_call.1} parent=1 // pred_check_branch
      %34 = sbr.rel (0) target = $region13
    $region12: #{tpu_custom_call.1} parent=1 // pred_region
      _
    $region13: #{tpu_custom_call.1} parent=1 // pred_fallthru
      _
    // Predicated region
    $region14: #{tpu_custom_call.1} parent=1 // pred_check
      _
    $region15: #{tpu_custom_call.1} parent=1 // pred_check_branch
      %36 = sbr.rel (0) target = $region17
    $region16: #{tpu_custom_call.1} parent=1 // pred_region
      %37 = dma.done [#allocation3], 64
    $region17: #{tpu_custom_call.1} parent=1 // pred_fallthru
      _
    // Predicated region
    $region18: #{tpu_custom_call.1} parent=1 // pred_check
      _
    $region19: #{tpu_custom_call.1} parent=1 // pred_check_branch
      %39 = sbr.rel (0) target = $region21
    $region20: #{tpu_custom_call.1} parent=1 // pred_region
      %40 = dma.done [#allocation6], 2048
    $region21: #{tpu_custom_call.1} parent=1 // pred_fallthru
      _
    %v42 = vld [vmem:[#allocation2] sm:$0xf]
    %v45 = vunpack.c.l.s4 1983009808
    %v46 = vunpack.c.0.s8 %v45
    %v47 = vlaneseq
    %v48 = vshrl.u32 %v47, 7
    %v49 = vsub.s32 %v46, %v48
    %v50 = vrot.slane %v42, %v49
    %v51 = vcombine.high %v50, %v50
    %v54 = vpack.c.bf16 %v50, %v50
    %v55 = vpack.c.bf16 %v51, %v51
    %v56 = vld [vmem:[#allocation5] sm:$0xf]
    %v57 = vld [vmem:[#allocation5 + $0x4] sm:$0xf]
    %v58 = vld [vmem:[#allocation5 + $0x8] sm:$0xf]
    %v59 = vld [vmem:[#allocation5 + $0xc] sm:$0xf]
    %v60 = vld [vmem:[#allocation5 + $0x10] sm:$0xf]
    %v61 = vld [vmem:[#allocation5 + $0x14] sm:$0xf]
    %v62 = vld [vmem:[#allocation5 + $0x18] sm:$0xf]
    %v63 = vld [vmem:[#allocation5 + $0x1c] sm:$0xf]
    %v64 = vld [vmem:[#allocation5 + $0x20] sm:$0xf]
    %v65 = vld [vmem:[#allocation5 + $0x24] sm:$0xf]
    %v66 = vld [vmem:[#allocation5 + $0x28] sm:$0xf]
    %v67 = vld [vmem:[#allocation5 + $0x2c] sm:$0xf]
    %v68 = vld [vmem:[#allocation5 + $0x30] sm:$0xf]
    %v69 = vld [vmem:[#allocation5 + $0x34] sm:$0xf]
    %v70 = vld [vmem:[#allocation5 + $0x38] sm:$0xf]
    %v71 = vld [vmem:[#allocation5 + $0x3c] sm:$0xf]
    %v72 = vld [vmem:[#allocation5 + $0x40] sm:$0xf]
    %v73 = vld [vmem:[#allocation5 + $0x44] sm:$0xf]
    %v74 = vld [vmem:[#allocation5 + $0x48] sm:$0xf]
    %v75 = vld [vmem:[#allocation5 + $0x4c] sm:$0xf]
    %v76 = vld [vmem:[#allocation5 + $0x50] sm:$0xf]
    %v77 = vld [vmem:[#allocation5 + $0x54] sm:$0xf]
    %v78 = vld [vmem:[#allocation5 + $0x58] sm:$0xf]
    %v79 = vld [vmem:[#allocation5 + $0x5c] sm:$0xf]
    %v80 = vld [vmem:[#allocation5 + $0x60] sm:$0xf]
    %v81 = vld [vmem:[#allocation5 + $0x64] sm:$0xf]
    %v82 = vld [vmem:[#allocation5 + $0x68] sm:$0xf]
    %v83 = vld [vmem:[#allocation5 + $0x6c] sm:$0xf]
    %v84 = vld [vmem:[#allocation5 + $0x70] sm:$0xf]
    %v85 = vld [vmem:[#allocation5 + $0x74] sm:$0xf]
    %v86 = vld [vmem:[#allocation5 + $0x78] sm:$0xf]
    %v87 = vld [vmem:[#allocation5 + $0x7c] sm:$0xf]
    %v88 = vld [vmem:[%s2] sm:$0x1]
    %v90 = vlaneseq
    %v91 = vshrl.u32 %v90, 7
    %v92 = vsub.s32 0, %v91
    %v93 = vrot.slane %v88, %v92
    %v127 = vunpack.c.l.b16 %v56
    %v128 = vunpack.c.l.b16 %v57
    %v129 = vunpack.c.l.b16 %v58
    %v130 = vunpack.c.l.b16 %v59
    %v131 = vunpack.c.l.b16 %v60
    %v132 = vunpack.c.l.b16 %v61
    %v133 = vunpack.c.l.b16 %v62
    %v134 = vunpack.c.l.b16 %v63
    %v135 = vunpack.c.l.b16 %v64
    %v136 = vunpack.c.l.b16 %v65
    %v137 = vunpack.c.l.b16 %v66
    %v138 = vunpack.c.l.b16 %v67
    %v139 = vunpack.c.l.b16 %v68
    %v140 = vunpack.c.l.b16 %v69
    %v141 = vunpack.c.l.b16 %v70
    %v142 = vunpack.c.l.b16 %v71
    %v143 = vunpack.c.l.b16 %v72
    %v144 = vunpack.c.l.b16 %v73
    %v145 = vunpack.c.l.b16 %v74
    %v146 = vunpack.c.l.b16 %v75
    %v147 = vunpack.c.l.b16 %v76
    %v148 = vunpack.c.l.b16 %v77
    %v149 = vunpack.c.l.b16 %v78
    %v150 = vunpack.c.l.b16 %v79
    %v151 = vunpack.c.l.b16 %v80
    %v152 = vunpack.c.l.b16 %v81
    %v153 = vunpack.c.l.b16 %v82
    %v154 = vunpack.c.l.b16 %v83
    %v155 = vunpack.c.l.b16 %v84
    %v156 = vunpack.c.l.b16 %v85
    %v157 = vunpack.c.l.b16 %v86
    %v158 = vunpack.c.l.b16 %v87
    %v159 = vpack.c.b16 %v128, %v127
    %v160 = vpack.c.b16 %v130, %v129
    %v161 = vpack.c.b16 %v132, %v131
    %v162 = vpack.c.b16 %v134, %v133
    %v163 = vpack.c.b16 %v136, %v135
    %v164 = vpack.c.b16 %v138, %v137
    %v165 = vpack.c.b16 %v140, %v139
    %v166 = vpack.c.b16 %v142, %v141
    %v167 = vpack.c.b16 %v144, %v143
    %v168 = vpack.c.b16 %v146, %v145
    %v169 = vpack.c.b16 %v148, %v147
    %v170 = vpack.c.b16 %v150, %v149
    %v171 = vpack.c.b16 %v152, %v151
    %v172 = vpack.c.b16 %v154, %v153
    %v173 = vpack.c.b16 %v156, %v155
    %v174 = vpack.c.b16 %v158, %v157
    %191 = vmatprep.subr.bf16.mxu0 0
    %192 = vmatpush1.bf16.msra.mxu0 %v159
    %193 = vmatprep.subr.bf16.mxu0 0
    %194 = vmatpush1.bf16.msra.mxu0 %v160
    %195 = vmatprep.subr.bf16.mxu0 0
    %196 = vmatpush1.bf16.msra.mxu0 %v161
    %197 = vmatprep.subr.bf16.mxu0 0
    %198 = vmatpush1.bf16.msra.mxu0 %v162
    %199 = vmatprep.subr.bf16.mxu0 0
    %200 = vmatpush1.bf16.msra.mxu0 %v163
    %201 = vmatprep.subr.bf16.mxu0 0
    %202 = vmatpush1.bf16.msra.mxu0 %v164
    %203 = vmatprep.subr.bf16.mxu0 0
    %204 = vmatpush1.bf16.msra.mxu0 %v165
    %205 = vmatprep.subr.bf16.mxu0 0
    %206 = vmatpush1.bf16.msra.mxu0 %v166
    %207 = vmatprep.subr.bf16.mxu0 0
    %208 = vmatpush1.bf16.msra.mxu0 %v167
    %209 = vmatprep.subr.bf16.mxu0 0
    %210 = vmatpush1.bf16.msra.mxu0 %v168
    %211 = vmatprep.subr.bf16.mxu0 0
    %212 = vmatpush1.bf16.msra.mxu0 %v169
    %213 = vmatprep.subr.bf16.mxu0 0
    %214 = vmatpush1.bf16.msra.mxu0 %v170
    %215 = vmatprep.subr.bf16.mxu0 0
    %216 = vmatpush1.bf16.msra.mxu0 %v171
    %217 = vmatprep.subr.bf16.mxu0 0
    %218 = vmatpush1.bf16.msra.mxu0 %v172
    %219 = vmatprep.subr.bf16.mxu0 0
    %220 = vmatpush1.bf16.msra.mxu0 %v173
    %221 = vmatprep.subr.bf16.mxu0 0
    %222 = vmatpush1.bf16.msra.mxu0 %v174
    %223 = vmatprep.mubr.bf16.mxu0 %v55
    %224 = vmatmul.mubr.bf16.gmra.mrb[0].mxu0 %v54
    %v225 = vpop.f32.mrb[0].mxu0
    %v226 = vadd.f32 %v93, %v225
    %v227 = vpop.f32.mrb[0].mxu0
    %v228 = vpop.f32.mrb[0].mxu0
    %v229 = vpop.f32.mrb[0].mxu0
    %230 = vdwg.mxu0
    %v231 = vpack.c.bf16 %v226, %v226
    %232 = vst [vmem:[#allocation7] sm:$0x1] %v231
    // Predicated region
    $region22: #{tpu_custom_call.1} parent=1 // pred_check
      _
    $region23: #{tpu_custom_call.1} parent=1 // pred_check_branch
      %234 = sbr.rel (0) target = $region25
    $region24: #{tpu_custom_call.1} parent=1 // pred_region
      %s236 = ssub.s32 16, 16
      %237 = vsyncadd [#allocation4], %s236
      %s239 = sshll.u32 [#allocation7], 4
      %s240 = int_to_ptr.vmem [resolvable:$true] %s239
      %242 = dma.vmem_to_hbm [thread:$0]  %s240, 16, %s3, [#allocation4]
    $region25: #{tpu_custom_call.1} parent=1 // pred_fallthru
      _
    // Predicated region
    $region26: #{tpu_custom_call.1} parent=1 // pred_check
      _
    $region27: #{tpu_custom_call.1} parent=1 // pred_check_branch
      %244 = sbr.rel (0) target = $region29
    $region28: #{tpu_custom_call.1} parent=1 // pred_region
      %245 = dma.done [#allocation4], 16
    $region29: #{tpu_custom_call.1} parent=1 // pred_fallthru
      _
    %246 = vsyncpa [#allocation3], 1
    %247 = vsyncpa [#allocation6], 1
    %248 = vsyncpa [#allocation4], 1

</llo_original>
